<compile_context>
chip_gen: v6e
topology: v6e:2x2x1
jax: 0.10.0
libtpu: 0.0.40
codegen_flags: <defaults>
</compile_context>

<pallas_src>
import math

import jax
import jax.numpy as jnp
from jax.experimental import pallas as pl
from jax.experimental.pallas import tpu as pltpu


_VMEM_LIMIT_BYTES = 48 << 20   # < 64 MiB physical VMEM on v7x; roomy on v5e/v6e
_TARGET_TILE_BYTES = 4 << 20   # ~86% of measured f32-add HBM roofline


def _residual_block_kernel(x_ref, o_ref):
    x = x_ref[...]
    # blocks(x) == x and shortcut(x) == x  ->  out = x + x
    o_ref[...] = x + x


def _compiler_params():
    return pltpu.CompilerParams(
        dimension_semantics=("parallel",),
        vmem_limit_bytes=_VMEM_LIMIT_BYTES,
    )


def residual_block_forward(x, in_channels, out_channels):
    """Pallas forward for ResidualBlock(in_channels, out_channels)."""
    assert x.shape[1] == in_channels
    # TODO(synk): in_channels/out_channels only select which Identity runs in
    # the reference module; both paths are Identity so the math is unaffected.

    orig_shape = x.shape
    dtype = x.dtype
    n = x.size
    itemsize = jnp.dtype(dtype).itemsize
    cost = pl.CostEstimate(
        flops=n, transcendentals=0, bytes_accessed=2 * n * itemsize
    )

    if n % 128 == 0:
        # Fast path: lane-dense 2D slab (rows, width) with width a large
        # multiple of 128 so stores are long unmasked streams.  Prefer a
        # width that leaves rows >= 8 (full sublane tiles).
        width = None
        for cand in (2048, 1024, 512, 256, 128):
            if n % cand == 0 and (n // cand) >= 8:
                width = cand
                break
        if width is None:
            for cand in (2048, 1024, 512, 256, 128):
                if n % cand == 0:
                    width = cand
                    break
        rows = n // width
        x2d = jnp.reshape(x, (rows, width))

        bytes_per_row = width * itemsize
        tile_rows = max(8, (_TARGET_TILE_BYTES // bytes_per_row) // 8 * 8)
        if tile_rows >= rows:
            if rows >= 64:
                # Split mid-size inputs into >=2 grid steps so both v7x
                # TensorCores get work (neutral on single-TC v5e/v6e).
                tile_rows = max(8, (rows // 2) // 8 * 8)
            else:
                tile_rows = rows  # small input: one full-extent block

        grid = (pl.cdiv(rows, tile_rows),)
        out2d = pl.pallas_call(
            _residual_block_kernel,
            out_shape=jax.ShapeDtypeStruct((rows, width), dtype),
            grid=grid,
            in_specs=[pl.BlockSpec((tile_rows, width), lambda i: (i, 0))],
            out_specs=pl.BlockSpec((tile_rows, width), lambda i: (i, 0)),
            compiler_params=_compiler_params(),
            cost_estimate=cost,
        )(x2d)
        return jnp.reshape(out2d, orig_shape)

    # Rare ragged path (element count not a multiple of 128 lanes): keep the
    # original shape, tile only the leading dim; trailing dims stay at full
    # extent so the (8,128) divisibility rule is satisfied and no extra
    # pad/slice HBM passes are needed.
    # TODO(synk): a masked tail store on a lane-dense slab would be faster when
    # trailing dims are narrow; not needed for typical conv activations.
    shaped = x if x.ndim >= 2 else jnp.reshape(x, (1, n))
    lead = shaped.shape[0]
    trailing = shaped.shape[1:]
    row_bytes = max(1, math.prod(trailing) * itemsize)
    tile_lead = max(1, _TARGET_TILE_BYTES // row_bytes)
    if shaped.ndim == 2:
        # block's second-to-last dim must be a multiple of 8 or full extent
        tile_lead = max(8, tile_lead // 8 * 8)
    tile_lead = min(tile_lead, lead)

    block_shape = (tile_lead,) + trailing
    idx_map = lambda i: (i,) + (0,) * len(trailing)
    grid = (pl.cdiv(lead, tile_lead),)
    out = pl.pallas_call(
        _residual_block_kernel,
        out_shape=jax.ShapeDtypeStruct(shaped.shape, dtype),
        grid=grid,
        in_specs=[pl.BlockSpec(block_shape, idx_map)],
        out_specs=pl.BlockSpec(block_shape, idx_map),
        compiler_params=_compiler_params(),
        cost_estimate=cost,
    )(shaped)
    return jnp.reshape(out, orig_shape)


# No donate_argnums: callers (including the test below) may reuse x after the
# call.  If the caller guarantees x is dead afterwards, add donate_argnums=(0,)
# and input_output_aliases={0: 0} to reuse the input buffer in place.
residual_block_forward_jit = jax.jit(
    residual_block_forward, static_argnames=("in_channels", "out_channels")
)


if __name__ == "__main__":
    key = jax.random.PRNGKey(0)
    # NCHW input consistent with a conv-style residual block
    batch, channels, spatial = 2, 4, 16
    x = jax.random.normal(key, (batch, channels, spatial, spatial), dtype=jnp.float32)

    # ResidualBlock(in_channels=4, out_channels=4): no parameters
    # (blocks and shortcut are both nn.Identity in this module).
    out = residual_block_forward_jit(x, in_channels=channels, out_channels=channels)
    out = jax.block_until_ready(out)

    # correctness check against the exact PyTorch semantics (x + x)
    expected = x + x
    assert out.shape == x.shape and out.dtype == x.dtype
    assert jnp.allclose(out, expected, atol=1e-6), "mismatch vs reference"

    print("KERNEL_OK")
</pallas_src>

<mosaic_0001>
module attributes {stable_mosaic.version = 11 : i64} {
  func.func @_residual_block_kernel(%arg0: i32, %arg1: memref<8x256xf32, #tpu.memory_space<vmem>>, %arg2: memref<8x256xf32, #tpu.memory_space<vmem>>) attributes {dimension_semantics = [#tpu.dimension_semantics<parallel>], iteration_bounds = array<i64: 1>, scalar_prefetch = 0 : i64, scratch_operands = 0 : i64, tpu.core_type = #tpu.core_type<tc>, window_params = [{transform_indices = @transform_0, window_bounds = array<i64: 8, 256>}, {transform_indices = @transform_1, window_bounds = array<i64: 8, 256>}]} {
    %c0 = arith.constant 0 : index
    %c0_0 = arith.constant 0 : index
    %0 = vector.load %arg1[%c0, %c0_0] : memref<8x256xf32, #tpu.memory_space<vmem>>, vector<8x256xf32>
    %1 = arith.addf %0, %0 : vector<8x256xf32>
    %c0_1 = arith.constant 0 : index
    %c0_2 = arith.constant 0 : index
    %2 = vector.load %arg2[%c0_1, %c0_2] : memref<8x256xf32, #tpu.memory_space<vmem>>, vector<8x256xf32>
    tpu.vector_store %arg2[%c0_1, %c0_2], %1 {strides = array<i32>} : memref<8x256xf32, #tpu.memory_space<vmem>>, vector<8x256xf32>,
    return
  }
  func.func @transform_0(%arg0: i32) -> (i32, i32) {
    %c0_i32 = arith.constant 0 : i32
    %c0_i32_0 = arith.constant 0 : i32
    return %arg0, %c0_i32 : i32, i32
  }
  func.func @transform_1(%arg0: i32) -> (i32, i32) {
    %c0_i32 = arith.constant 0 : i32
    %c0_i32_0 = arith.constant 0 : i32
    return %arg0, %c0_i32 : i32, i32
  }
}

</mosaic_0001>

<llo_original>
// kernel: residual_block_forward.1
$region0: #{residual_block_forward.1}
  #allocation0 [shape = 'u32[]', space=smem, size = 0x4, offset = 0x4, fixed_abs, tag = 'smem constant byte address 0x4 - core index']
  #allocation1 [shape = 'u32[144,128]{1,0:T(1,128)}', space=vmem, size = 0x12000, scoped, tag = 'internal scratch']
  %s0 = inlined_call_operand.vmem [shape: f32[8,256], index: 0, kind: input, shape index: {}]
  %s1 = inlined_call_operand.vmem [shape: f32[8,256], index: 1, kind: output, shape index: {}]
  %s2 = sld [smem:[#allocation0]]
  $region14: #{residual_block_forward.1} parent=0
    _
  %s4 = ssub.s32 1, %s2
  %s5 = scalar_select 0, %s4, %s2
  // Predicated region
  $region2: #{residual_block_forward.1} parent=0 // pred_check
    _
  $region3: #{residual_block_forward.1} parent=0 // pred_check_branch
    %7 = sbr.rel (0) target = $region5
  $region4: #{residual_block_forward.1} parent=0 // pred_region
    _
  $region5: #{residual_block_forward.1} parent=0 // pred_fallthru
    _
  %v8 = vld [vmem:[%s0] sm:$0xff]
  %v9 = vld [vmem:[%s0 + $0x8] sm:$0xff]
  %v10 = vadd.f32 %v8, %v8
  %v11 = vadd.f32 %v9, %v9
  %12 = vst [vmem:[%s1] sm:$0xff] %v10
  %13 = vst [vmem:[%s1 + $0x8] sm:$0xff] %v11
  // Predicated region
  $region6: #{residual_block_forward.1} parent=0 // pred_check
    _
  $region7: #{residual_block_forward.1} parent=0 // pred_check_branch
    %15 = sbr.rel (0) target = $region9
  $region8: #{residual_block_forward.1} parent=0 // pred_region
    _
  $region9: #{residual_block_forward.1} parent=0 // pred_fallthru
    _
  // Predicated region
  $region10: #{residual_block_forward.1} parent=0 // pred_check
    _
  $region11: #{residual_block_forward.1} parent=0 // pred_check_branch
    %17 = sbr.rel (0) target = $region13
  $region12: #{residual_block_forward.1} parent=0 // pred_region
    _
  $region13: #{residual_block_forward.1} parent=0 // pred_fallthru
    _

</llo_original>
